<compile_context>
chip_gen: v7x
topology: tpu7x:2x2x1
jax: 0.10.0
libtpu: 0.0.40
codegen_flags: <defaults>
</compile_context>

<pallas_src>
import functools
import math

import jax
import jax.numpy as jnp
from jax.experimental import pallas as pl
from jax.experimental.pallas import tpu as pltpu

_LANE = 128
_SUBLANE_BF16 = 16          # bf16 packs 2 rows/sublane -> pad tiny batches to 16
_MIB = 1 << 20
_VMEM_TILE_BUDGET = 40 * _MIB   # conservative cross-generation budget for big tiles


def _round_up(x, m):
    return ((x + m - 1) // m) * m


def _apply_activation(h, activation):
    if activation == "relu":
        return jnp.maximum(h, 0.0)
    if activation == "leakyrelu":
        # max(h, 0.1*h) == LeakyReLU(0.1); cheaper than compare+select.
        return jnp.maximum(h, 0.1 * h)
    if activation == "sigmoid":
        return jax.nn.sigmoid(h)
    if activation == "tanh":
        return jnp.tanh(h)
    return h


# --------------------------------------------------------------------------- #
# Kernel
# --------------------------------------------------------------------------- #
def _fused_mlp_kernel(*refs, act_flags, activation):
    # refs = (x_ref, w0, b0, w1, b1, ..., o_ref)
    x_ref = refs[0]
    o_ref = refs[-1]
    params = refs[1:-1]

    h = x_ref[...]                       # (tile_b, F0p) bf16
    for li, act in enumerate(act_flags):
        w_ref = params[2 * li]           # (Fin_p, Fout_p) bf16, zero-padded
        b_ref = params[2 * li + 1]       # (1, Fout_p)    f32, zero-padded
        lhs = h if h.dtype == jnp.bfloat16 else h.astype(jnp.bfloat16)
        acc = jnp.dot(lhs, w_ref[...], preferred_element_type=jnp.float32)
        acc = acc + b_ref[...]
        if act:                          # activation only inside hidden_layers
            acc = _apply_activation(acc, activation)
        h = acc
    o_ref[...] = h.astype(o_ref.dtype)


def _vmem_need_bytes(tile_b, dims_p, single_buffer_weights):
    """Rough VMEM footprint of one pipelined kernel instance."""
    wbuf = 1 if single_buffer_weights else 2
    need = 0
    for i in range(len(dims_p) - 1):
        need += dims_p[i] * dims_p[i + 1] * 2 * wbuf   # bf16 weights
        need += dims_p[i + 1] * 4 * wbuf               # f32 bias rows
    need += 2 * tile_b * dims_p[0] * 2                 # bf16 x (double-buffered)
    need += 2 * tile_b * dims_p[-1] * 4                # f32 out (double-buffered)
    need += 2 * tile_b * max(dims_p) * 4               # f32 intermediates (rough)
    return need


def _cost_estimate(Bp, dims_p, act_flags, activation, weights_pad, biases_pad):
    flops = sum(2 * Bp * dims_p[i] * dims_p[i + 1] for i in range(len(dims_p) - 1))
    transcendentals = 0
    if activation in ("sigmoid", "tanh"):
        transcendentals = sum(Bp * dims_p[i + 1]
                              for i, a in enumerate(act_flags) if a)
    bytes_accessed = Bp * dims_p[0] * 2 + Bp * dims_p[-1] * 4
    bytes_accessed += sum(w.size * 2 for w in weights_pad)
    bytes_accessed += sum(b.size * 4 for b in biases_pad)
    return pl.CostEstimate(flops=int(flops), transcendentals=int(transcendentals),
                           bytes_accessed=int(bytes_accessed))


def _fused_mlp_call(x_pad, weights_pad, biases_pad, *, act_flags, activation,
                    tile_b, single_buffer_weights, vmem_limit_bytes,
                    cost_estimate):
    Bp, F0p = x_pad.shape
    Fout_p = weights_pad[-1].shape[1]
    grid = (Bp // tile_b,)

    def _param_spec(shape):
        # Grid-invariant block (index_map is constant): a single VMEM buffer
        # is enough; halves weight VMEM vs. default double-buffering.
        if single_buffer_weights:
            return pl.BlockSpec(shape, lambda i: (0, 0),
                                pipeline_mode=pl.Buffered(1))
        return pl.BlockSpec(shape, lambda i: (0, 0))

    in_specs = [pl.BlockSpec((tile_b, F0p), lambda i: (i, 0))]
    args = [x_pad]
    for w, b in zip(weights_pad, biases_pad):
        in_specs.append(_param_spec(w.shape))
        in_specs.append(_param_spec(b.shape))
        args.append(w)
        args.append(b)

    kernel = functools.partial(_fused_mlp_kernel, act_flags=act_flags,
                               activation=activation)
    return pl.pallas_call(
        kernel,
        out_shape=jax.ShapeDtypeStruct((Bp, Fout_p), jnp.float32),
        grid=grid,
        in_specs=in_specs,
        out_specs=pl.BlockSpec((tile_b, Fout_p), lambda i: (i, 0)),
        compiler_params=pltpu.CompilerParams(
            dimension_semantics=("parallel",),
            vmem_limit_bytes=vmem_limit_bytes),
        cost_estimate=cost_estimate,
    )(*args)


def _forward_impl(x, weights_pad, biases_pad, *, act_flags, activation,
                  dims_eff_p, num_cls, single_buffer_weights):
    """Pad + bf16-cast -> fused kernel -> slice. Runs fully under jax.jit."""
    B, fin = x.shape
    F0p = dims_eff_p[0]

    # ---- batch tile selection (static at trace time) ----
    if B <= _LANE:
        Bp = _round_up(B, _SUBLANE_BF16)
        tile_b = Bp
    else:
        tile_b = _LANE
        for cand in (512, 256):
            Bp_c = _round_up(B, cand)
            if (B >= 2 * cand                      # grid >= 2 (keeps both v7x TCs busy)
                    and Bp_c - B <= cand // 2      # bounded padding waste
                    and _vmem_need_bytes(cand, dims_eff_p,
                                         single_buffer_weights) <= _VMEM_TILE_BUDGET):
                tile_b = cand
                break
        Bp = _round_up(B, tile_b)

    need = _vmem_need_bytes(tile_b, dims_eff_p, single_buffer_weights)
    vmem_limit = int(min(64 * _MIB, max(32 * _MIB, 1.25 * need + 2 * _MIB)))

    # ---- pad + bf16 cast fused into one op (skipped entirely when aligned) ----
    if (Bp, F0p) == (B, fin):
        x_pad = x.astype(jnp.bfloat16)
    else:
        x_pad = jnp.pad(x, ((0, Bp - B), (0, F0p - fin))).astype(jnp.bfloat16)

    cost = _cost_estimate(Bp, dims_eff_p, act_flags, activation,
                          weights_pad, biases_pad)

    out_pad = _fused_mlp_call(
        x_pad, weights_pad, biases_pad,
        act_flags=act_flags, activation=activation, tile_b=tile_b,
        single_buffer_weights=single_buffer_weights,
        vmem_limit_bytes=vmem_limit, cost_estimate=cost)
    return out_pad[:B, :num_cls]


# --------------------------------------------------------------------------- #
# Module wrapper (mirrors PyTorch Net)
# --------------------------------------------------------------------------- #
class PallasNet:
    """layer1 -> (hidden Linear + act)* -> header, fused into one pallas_call."""

    def __init__(self, input_size, num_cls, hidden_layer_list,
                 activate_func="relu", key=None):
        if key is None:
            key = jax.random.PRNGKey(0)
        self.activate_func = activate_func
        self.input_size = input_size
        self.num_cls = num_cls

        dims = [input_size] + list(hidden_layer_list) + [num_cls]
        n_raw = len(dims) - 1

        # f32 master params (PyTorch nn.Linear default init U(-1/sqrt(fan_in), +)).
        self.weights_f32 = []
        self.biases_f32 = []
        for i in range(n_raw):
            key, kw, kb = jax.random.split(key, 3)
            bound = 1.0 / math.sqrt(dims[i])
            w = jax.random.uniform(kw, (dims[i], dims[i + 1]), jnp.float32,
                                   -bound, bound)
            b = jax.random.uniform(kb, (1, dims[i + 1]), jnp.float32,
                                   -bound, bound)
            self.weights_f32.append(w)
            self.biases_f32.append(b)

        # Per-layer "activation after this Linear" flags (matches Net.forward:
        # none after layer1, one after each hidden Linear, none after header).
        raw_act = [1 <= i <= n_raw - 2 for i in range(n_raw)]

        # Algebraic fold: two consecutive Linears with no activation between
        # them collapse into one matmul (layer1 + first hidden Linear).
        # Done in f32 before the bf16 cast; skipped if it would increase FLOPs.
        eff = []
        for w, b, act in zip(self.weights_f32, self.biases_f32, raw_act):
            if eff and not eff[-1][2]:
                w0, b0, _ = eff[-1]
                if (w0.shape[0] * w.shape[1]
                        <= w0.shape[0] * w0.shape[1] + w.shape[0] * w.shape[1]):
                    eff[-1] = (w0 @ w, b0 @ w + b, act)
                    continue
            eff.append((w, b, act))

        self.act_flags = tuple(bool(a) for (_, _, a) in eff)
        self.eff_f32 = [(w, b) for (w, b, _) in eff]

        # Padded, lane-dense kernel params: bf16 weights, f32 biases.
        dims_eff = [eff[0][0].shape[0]] + [w.shape[1] for (w, _, _) in eff]
        self.dims_eff_p = tuple(_round_up(d, _LANE) for d in dims_eff)
        self.weights_pad = []
        self.biases_pad = []
        for li, (w, b, _) in enumerate(eff):
            fin_p, fout_p = self.dims_eff_p[li], self.dims_eff_p[li + 1]
            # Zero-padded rows/cols are numerically inert (zeros in, zeros out).
            w_p = jnp.zeros((fin_p, fout_p), jnp.float32)
            w_p = w_p.at[: w.shape[0], : w.shape[1]].set(w)
            b_p = jnp.zeros((1, fout_p), jnp.float32)
            b_p = b_p.at[:, : b.shape[1]].set(b)
            self.weights_pad.append(w_p.astype(jnp.bfloat16))
            self.biases_pad.append(b_p)

        common = dict(act_flags=self.act_flags, activation=activate_func,
                      dims_eff_p=self.dims_eff_p, num_cls=num_cls)
        # Preferred: single-buffered grid-invariant weights. Fallback: plain
        # BlockSpecs (in case the installed JAX rejects Buffered(1) here).
        self._fwd_primary = jax.jit(functools.partial(
            _forward_impl, single_buffer_weights=True, **common))
        self._fwd_fallback = jax.jit(functools.partial(
            _forward_impl, single_buffer_weights=False, **common))
        self._use_fallback = False

    def __call__(self, x):
        assert x.shape[1] == self.input_size
        if not self._use_fallback:
            try:
                return self._fwd_primary(x, self.weights_pad, self.biases_pad)
            except Exception:
                self._use_fallback = True
        return self._fwd_fallback(x, self.weights_pad, self.biases_pad)


# --------------------------------------------------------------------------- #
# References
# --------------------------------------------------------------------------- #
def _reference_forward(net, x):
    """Pure-JAX reference mirroring the kernel math (folded layers, bf16 MXU
    operands, f32 accumulation)."""
    h = x
    for (w, b), act in zip(net.eff_f32, net.act_flags):
        h = jnp.dot(h.astype(jnp.bfloat16), w.astype(jnp.bfloat16),
                    preferred_element_type=jnp.float32) + b
        if act:
            h = _apply_activation(h, net.activate_func)
    return h


def _reference_forward_f32(net, x):
    """Un-folded full-f32 reference (matches PyTorch Net math)."""
    h = x
    n = len(net.weights_f32)
    for i, (w, b) in enumerate(zip(net.weights_f32, net.biases_f32)):
        h = h @ w + b
        if 1 <= i <= n - 2:
            h = _apply_activation(h, net.activate_func)
    return h


if __name__ == "__main__":
    key = jax.random.PRNGKey(0)
    key, kx, kparams = jax.random.split(key, 3)

    batch = 8
    input_size = 32
    hidden_layer_list = [64, 32]
    num_cls = 16

    x = jax.random.normal(kx, (batch, input_size), dtype=jnp.float32)

    ok = True
    for act in ("relu", "leakyrelu"):
        net = PallasNet(input_size, num_cls, hidden_layer_list,
                        activate_func=act, key=kparams)
        out = jax.block_until_ready(net(x))
        assert out.shape == (batch, num_cls)

        ref = _reference_forward(net, x)
        if not jnp.allclose(out, ref, atol=2e-3, rtol=2e-3):
            ok = False
            print(f"MISMATCH ({act}) vs bf16 reference: max_abs_err="
                  f"{float(jnp.max(jnp.abs(out - ref)))}")

        # Informational: drift vs. the full-f32 (PyTorch-equivalent) math.
        ref32 = _reference_forward_f32(net, x)
        _ = float(jnp.max(jnp.abs(out - ref32)))  # expected ~bf16-level (<1e-2)

    if ok:
        print("KERNEL_OK")
</pallas_src>

<mosaic_0001>
module attributes {stable_mosaic.version = 11 : i64} {
  func.func @_fused_mlp_kernel(%arg0: i32, %arg1: memref<16x128xbf16, #tpu.memory_space<vmem>>, %arg2: memref<128x128xbf16, #tpu.memory_space<vmem>>, %arg3: memref<1x128xf32, #tpu.memory_space<vmem>>, %arg4: memref<128x128xbf16, #tpu.memory_space<vmem>>, %arg5: memref<1x128xf32, #tpu.memory_space<vmem>>, %arg6: memref<16x128xf32, #tpu.memory_space<vmem>>) attributes {dimension_semantics = [#tpu.dimension_semantics<parallel>], iteration_bounds = array<i64: 1>, scalar_prefetch = 0 : i64, scratch_operands = 0 : i64, tpu.core_type = #tpu.core_type<tc>, window_params = [{transform_indices = @transform_0, window_bounds = array<i64: 16, 128>}, {pipeline_mode = #tpu.pipeline_mode<synchronous>, transform_indices = @transform_1, window_bounds = array<i64: 128, 128>}, {pipeline_mode = #tpu.pipeline_mode<synchronous>, transform_indices = @transform_2, window_bounds = array<i64: 1, 128>}, {pipeline_mode = #tpu.pipeline_mode<synchronous>, transform_indices = @transform_3, window_bounds = array<i64: 128, 128>}, {pipeline_mode = #tpu.pipeline_mode<synchronous>, transform_indices = @transform_4, window_bounds = array<i64: 1, 128>}, {transform_indices = @transform_5, window_bounds = array<i64: 16, 128>}]} {
    %c0 = arith.constant 0 : index
    %c0_0 = arith.constant 0 : index
    %0 = vector.load %arg1[%c0, %c0_0] : memref<16x128xbf16, #tpu.memory_space<vmem>>, vector<16x128xbf16>
    %c0_1 = arith.constant 0 : index
    %c0_2 = arith.constant 0 : index
    %1 = vector.load %arg2[%c0_1, %c0_2] : memref<128x128xbf16, #tpu.memory_space<vmem>>, vector<128x128xbf16>
    %cst = arith.constant dense<0.000000e+00> : vector<16x128xf32>
    %2 = tpu.matmul %0, %1, %cst {dimension_numbers = #tpu.dot_dimension_numbers<[1], [0], [0], [1], [0, 0, 1, 1], [], []>} : vector<16x128xbf16>, vector<128x128xbf16>, vector<16x128xf32> -> vector<16x128xf32>
    %c0_3 = arith.constant 0 : index
    %c0_4 = arith.constant 0 : index
    %3 = vector.load %arg3[%c0_3, %c0_4] : memref<1x128xf32, #tpu.memory_space<vmem>>, vector<1x128xf32>
    %4 = vector.broadcast %3 : vector<1x128xf32> to vector<16x128xf32>
    %5 = arith.addf %2, %4 : vector<16x128xf32>
    %cst_5 = arith.constant 0.000000e+00 : f32
    %6 = vector.broadcast %cst_5 : f32 to vector<16x128xf32>
    %7 = arith.maximumf %5, %6 : vector<16x128xf32>
    %8 = arith.truncf %7 : vector<16x128xf32> to vector<16x128xbf16>
    %c0_6 = arith.constant 0 : index
    %c0_7 = arith.constant 0 : index
    %9 = vector.load %arg4[%c0_6, %c0_7] : memref<128x128xbf16, #tpu.memory_space<vmem>>, vector<128x128xbf16>
    %cst_8 = arith.constant dense<0.000000e+00> : vector<16x128xf32>
    %10 = tpu.matmul %8, %9, %cst_8 {dimension_numbers = #tpu.dot_dimension_numbers<[1], [0], [0], [1], [0, 0, 1, 1], [], []>} : vector<16x128xbf16>, vector<128x128xbf16>, vector<16x128xf32> -> vector<16x128xf32>
    %c0_9 = arith.constant 0 : index
    %c0_10 = arith.constant 0 : index
    %11 = vector.load %arg5[%c0_9, %c0_10] : memref<1x128xf32, #tpu.memory_space<vmem>>, vector<1x128xf32>
    %12 = vector.broadcast %11 : vector<1x128xf32> to vector<16x128xf32>
    %13 = arith.addf %10, %12 : vector<16x128xf32>
    %c0_11 = arith.constant 0 : index
    %c0_12 = arith.constant 0 : index
    %14 = vector.load %arg6[%c0_11, %c0_12] : memref<16x128xf32, #tpu.memory_space<vmem>>, vector<16x128xf32>
    tpu.vector_store %arg6[%c0_11, %c0_12], %13 {strides = array<i32>} : memref<16x128xf32, #tpu.memory_space<vmem>>, vector<16x128xf32>,
    return
  }
  func.func @transform_0(%arg0: i32) -> (i32, i32) {
    %c0_i32 = arith.constant 0 : i32
    %c0_i32_0 = arith.constant 0 : i32
    return %arg0, %c0_i32 : i32, i32
  }
  func.func @transform_1(%arg0: i32) -> (i32, i32) {
    %c0_i32 = arith.constant 0 : i32
    %c0_i32_0 = arith.constant 0 : i32
    %c0_i32_1 = arith.constant 0 : i32
    return %c0_i32, %c0_i32_0 : i32, i32
  }
  func.func @transform_2(%arg0: i32) -> (i32, i32) {
    %c0_i32 = arith.constant 0 : i32
    %c0_i32_0 = arith.constant 0 : i32
    %c0_i32_1 = arith.constant 0 : i32
    return %c0_i32, %c0_i32_0 : i32, i32
  }
  func.func @transform_3(%arg0: i32) -> (i32, i32) {
    %c0_i32 = arith.constant 0 : i32
    %c0_i32_0 = arith.constant 0 : i32
    %c0_i32_1 = arith.constant 0 : i32
    return %c0_i32, %c0_i32_0 : i32, i32
  }
  func.func @transform_4(%arg0: i32) -> (i32, i32) {
    %c0_i32 = arith.constant 0 : i32
    %c0_i32_0 = arith.constant 0 : i32
    %c0_i32_1 = arith.constant 0 : i32
    return %c0_i32, %c0_i32_0 : i32, i32
  }
  func.func @transform_5(%arg0: i32) -> (i32, i32) {
    %c0_i32 = arith.constant 0 : i32
    %c0_i32_0 = arith.constant 0 : i32
    return %arg0, %c0_i32 : i32, i32
  }
}

module attributes {stable_mosaic.version = 11 : i64} {
  func.func @_fused_mlp_kernel(%arg0: i32, %arg1: memref<16x128xbf16, #tpu.memory_space<vmem>>, %arg2: memref<128x128xbf16, #tpu.memory_space<vmem>>, %arg3: memref<1x128xf32, #tpu.memory_space<vmem>>, %arg4: memref<128x128xbf16, #tpu.memory_space<vmem>>, %arg5: memref<1x128xf32, #tpu.memory_space<vmem>>, %arg6: memref<16x128xf32, #tpu.memory_space<vmem>>) attributes {dimension_semantics = [#tpu.dimension_semantics<parallel>], iteration_bounds = array<i64: 1>, scalar_prefetch = 0 : i64, scratch_operands = 0 : i64, tpu.core_type = #tpu.core_type<tc>, window_params = [{transform_indices = @transform_0, window_bounds = array<i64: 16, 128>}, {pipeline_mode = #tpu.pipeline_mode<synchronous>, transform_indices = @transform_1, window_bounds = array<i64: 128, 128>}, {pipeline_mode = #tpu.pipeline_mode<synchronous>, transform_indices = @transform_2, window_bounds = array<i64: 1, 128>}, {pipeline_mode = #tpu.pipeline_mode<synchronous>, transform_indices = @transform_3, window_bounds = array<i64: 128, 128>}, {pipeline_mode = #tpu.pipeline_mode<synchronous>, transform_indices = @transform_4, window_bounds = array<i64: 1, 128>}, {transform_indices = @transform_5, window_bounds = array<i64: 16, 128>}]} {
    %c0 = arith.constant 0 : index
    %c0_0 = arith.constant 0 : index
    %0 = vector.load %arg1[%c0, %c0_0] : memref<16x128xbf16, #tpu.memory_space<vmem>>, vector<16x128xbf16>
    %c0_1 = arith.constant 0 : index
    %c0_2 = arith.constant 0 : index
    %1 = vector.load %arg2[%c0_1, %c0_2] : memref<128x128xbf16, #tpu.memory_space<vmem>>, vector<128x128xbf16>
    %cst = arith.constant dense<0.000000e+00> : vector<16x128xf32>
    %2 = tpu.matmul %0, %1, %cst {dimension_numbers = #tpu.dot_dimension_numbers<[1], [0], [0], [1], [0, 0, 1, 1], [], []>} : vector<16x128xbf16>, vector<128x128xbf16>, vector<16x128xf32> -> vector<16x128xf32>
    %c0_3 = arith.constant 0 : index
    %c0_4 = arith.constant 0 : index
    %3 = vector.load %arg3[%c0_3, %c0_4] : memref<1x128xf32, #tpu.memory_space<vmem>>, vector<1x128xf32>
    %4 = vector.broadcast %3 : vector<1x128xf32> to vector<16x128xf32>
    %5 = arith.addf %2, %4 : vector<16x128xf32>
    %cst_5 = arith.constant 0.000000e+00 : f32
    %6 = vector.broadcast %cst_5 : f32 to vector<16x128xf32>
    %7 = arith.maximumf %5, %6 : vector<16x128xf32>
    %8 = arith.truncf %7 : vector<16x128xf32> to vector<16x128xbf16>
    %c0_6 = arith.constant 0 : index
    %c0_7 = arith.constant 0 : index
    %9 = vector.load %arg4[%c0_6, %c0_7] : memref<128x128xbf16, #tpu.memory_space<vmem>>, vector<128x128xbf16>
    %cst_8 = arith.constant dense<0.000000e+00> : vector<16x128xf32>
    %10 = tpu.matmul %8, %9, %cst_8 {dimension_numbers = #tpu.dot_dimension_numbers<[1], [0], [0], [1], [0, 0, 1, 1], [], []>} : vector<16x128xbf16>, vector<128x128xbf16>, vector<16x128xf32> -> vector<16x128xf32>
    %c0_9 = arith.constant 0 : index
    %c0_10 = arith.constant 0 : index
    %11 = vector.load %arg5[%c0_9, %c0_10] : memref<1x128xf32, #tpu.memory_space<vmem>>, vector<1x128xf32>
    %12 = vector.broadcast %11 : vector<1x128xf32> to vector<16x128xf32>
    %13 = arith.addf %10, %12 : vector<16x128xf32>
    %c0_11 = arith.constant 0 : index
    %c0_12 = arith.constant 0 : index
    %14 = vector.load %arg6[%c0_11, %c0_12] : memref<16x128xf32, #tpu.memory_space<vmem>>, vector<16x128xf32>
    tpu.vector_store %arg6[%c0_11, %c0_12], %13 {strides = array<i32>} : memref<16x128xf32, #tpu.memory_space<vmem>>, vector<16x128xf32>,
    return
  }
  func.func @transform_0(%arg0: i32) -> (i32, i32) {
    %c0_i32 = arith.constant 0 : i32
    %c0_i32_0 = arith.constant 0 : i32
    return %arg0, %c0_i32 : i32, i32
  }
  func.func @transform_1(%arg0: i32) -> (i32, i32) {
    %c0_i32 = arith.constant 0 : i32
    %c0_i32_0 = arith.constant 0 : i32
    %c0_i32_1 = arith.constant 0 : i32
    return %c0_i32, %c0_i32_0 : i32, i32
  }
  func.func @transform_2(%arg0: i32) -> (i32, i32) {
    %c0_i32 = arith.constant 0 : i32
    %c0_i32_0 = arith.constant 0 : i32
    %c0_i32_1 = arith.constant 0 : i32
    return %c0_i32, %c0_i32_0 : i32, i32
  }
  func.func @transform_3(%arg0: i32) -> (i32, i32) {
    %c0_i32 = arith.constant 0 : i32
    %c0_i32_0 = arith.constant 0 : i32
    %c0_i32_1 = arith.constant 0 : i32
    return %c0_i32, %c0_i32_0 : i32, i32
  }
  func.func @transform_4(%arg0: i32) -> (i32, i32) {
    %c0_i32 = arith.constant 0 : i32
    %c0_i32_0 = arith.constant 0 : i32
    %c0_i32_1 = arith.constant 0 : i32
    return %c0_i32, %c0_i32_0 : i32, i32
  }
  func.func @transform_5(%arg0: i32) -> (i32, i32) {
    %c0_i32 = arith.constant 0 : i32
    %c0_i32_0 = arith.constant 0 : i32
    return %arg0, %c0_i32 : i32, i32
  }
}

</mosaic_0001>

<llo_original>
// kernel: _forward_impl.1
$region0: #{_forward_impl.1}
  #allocation0 [shape = 'u32[]', space=smem, size = 0x4, offset = 0x4, fixed_abs, tag = 'smem constant byte address 0x4 - core index']
  #allocation1 [shape = 'u32[144,128]{1,0:T(1,128)}', space=vmem, size = 0x12000, scoped, tag = 'internal scratch']
  %s0 = inlined_call_operand.vmem [shape: bf16[16,128], index: 0, kind: input, shape index: {}]
  %s1 = inlined_call_operand.hbm [shape: bf16[128,128], index: 1, kind: input, shape index: {}]
  %s2 = inlined_call_operand.vmem [shape: f32[1,128], index: 2, kind: input, shape index: {}]
  %s3 = inlined_call_operand.hbm [shape: bf16[128,128], index: 3, kind: input, shape index: {}]
  %s4 = inlined_call_operand.vmem [shape: f32[1,128], index: 4, kind: input, shape index: {}]
  %s5 = inlined_call_operand.vmem [shape: f32[16,128], index: 5, kind: output, shape index: {}]
  %s6 = sld [smem:[#allocation0]]
  $region38: #{_forward_impl.1} parent=0
    _
  %s8 = ssub.s32 1, %s6
  %s9 = scalar_select 0, %s8, %s6
  $region1: #{_forward_impl.1} parent=0
    #allocation2 [shape = 'u8[32768]{0}', space=vmem, size = 0x8000, scoped, tag = 'input window, operand 1, single buffered']
    #allocation3 [shape = 's32[1]{0}', space=sflag, size = 0x4, scoped, tag = 'scoped memory for _forward_impl.1']
    #allocation4 [shape = 'u8[32768]{0}', space=vmem, size = 0x8000, scoped, tag = 'input window, operand 3, single buffered']
    #allocation5 [shape = 's32[1]{0}', space=sflag, size = 0x4, scoped, tag = 'scoped memory for _forward_impl.1']
    %10 = vsyncpa [#allocation3], 0
    %11 = vsyncpa [#allocation5], 0
    // Predicated region
    $region2: #{_forward_impl.1} parent=1 // pred_check
      _
    $region3: #{_forward_impl.1} parent=1 // pred_check_branch
      %13 = sbr.rel (0) target = $region5
    $region4: #{_forward_impl.1} parent=1 // pred_region
      _
    $region5: #{_forward_impl.1} parent=1 // pred_fallthru
      _
    // Predicated region
    $region6: #{_forward_impl.1} parent=1 // pred_check
      _
    $region7: #{_forward_impl.1} parent=1 // pred_check_branch
      %15 = sbr.rel (0) target = $region9
    $region8: #{_forward_impl.1} parent=1 // pred_region
      %s17 = ssub.s32 1024, 1024
      %18 = vsyncadd [#allocation3], %s17
      %s19 = sshll.u32 [#allocation2], 4
      %s20 = int_to_ptr.vmem [resolvable:$true] %s19
      %25 = dma.hbm_to_vmem [thread:$0]  %s1, 1024, %s20, [#allocation3], 64, 64, 4
    $region9: #{_forward_impl.1} parent=1 // pred_fallthru
      _
    // Predicated region
    $region10: #{_forward_impl.1} parent=1 // pred_check
      _
    $region11: #{_forward_impl.1} parent=1 // pred_check_branch
      %27 = sbr.rel (0) target = $region13
    $region12: #{_forward_impl.1} parent=1 // pred_region
      _
    $region13: #{_forward_impl.1} parent=1 // pred_fallthru
      _
    // Predicated region
    $region14: #{_forward_impl.1} parent=1 // pred_check
      _
    $region15: #{_forward_impl.1} parent=1 // pred_check_branch
      %29 = sbr.rel (0) target = $region17
    $region16: #{_forward_impl.1} parent=1 // pred_region
      %s31 = ssub.s32 1024, 1024
      %32 = vsyncadd [#allocation5], %s31
      %s33 = sshll.u32 [#allocation4], 4
      %s34 = int_to_ptr.vmem [resolvable:$true] %s33
      %39 = dma.hbm_to_vmem [thread:$0]  %s3, 1024, %s34, [#allocation5], 64, 64, 4
    $region17: #{_forward_impl.1} parent=1 // pred_fallthru
      _
    // Predicated region
    $region18: #{_forward_impl.1} parent=1 // pred_check
      _
    $region19: #{_forward_impl.1} parent=1 // pred_check_branch
      %41 = sbr.rel (0) target = $region21
    $region20: #{_forward_impl.1} parent=1 // pred_region
      _
    $region21: #{_forward_impl.1} parent=1 // pred_fallthru
      _
    // Predicated region
    $region22: #{_forward_impl.1} parent=1 // pred_check
      _
    $region23: #{_forward_impl.1} parent=1 // pred_check_branch
      %43 = sbr.rel (0) target = $region25
    $region24: #{_forward_impl.1} parent=1 // pred_region
      %44 = dma.done [#allocation3], 1024
    $region25: #{_forward_impl.1} parent=1 // pred_fallthru
      _
    // Predicated region
    $region26: #{_forward_impl.1} parent=1 // pred_check
      _
    $region27: #{_forward_impl.1} parent=1 // pred_check_branch
      %46 = sbr.rel (0) target = $region29
    $region28: #{_forward_impl.1} parent=1 // pred_region
      %47 = dma.done [#allocation5], 1024
    $region29: #{_forward_impl.1} parent=1 // pred_fallthru
      _
    %v49 = vld [vmem:[%s0] sm:$0xf]
    %v50 = vld [vmem:[%s0 + $0x4] sm:$0xf]
    %v51 = vld [vmem:[#allocation2] sm:$0xf]
    %v52 = vld [vmem:[#allocation2 + $0x4] sm:$0xf]
    %v53 = vld [vmem:[#allocation2 + $0x8] sm:$0xf]
    %v54 = vld [vmem:[#allocation2 + $0xc] sm:$0xf]
    %v55 = vld [vmem:[#allocation2 + $0x10] sm:$0xf]
    %v56 = vld [vmem:[#allocation2 + $0x14] sm:$0xf]
    %v57 = vld [vmem:[#allocation2 + $0x18] sm:$0xf]
    %v58 = vld [vmem:[#allocation2 + $0x1c] sm:$0xf]
    %v59 = vld [vmem:[#allocation2 + $0x20] sm:$0xf]
    %v60 = vld [vmem:[#allocation2 + $0x24] sm:$0xf]
    %v61 = vld [vmem:[#allocation2 + $0x28] sm:$0xf]
    %v62 = vld [vmem:[#allocation2 + $0x2c] sm:$0xf]
    %v63 = vld [vmem:[#allocation2 + $0x30] sm:$0xf]
    %v64 = vld [vmem:[#allocation2 + $0x34] sm:$0xf]
    %v65 = vld [vmem:[#allocation2 + $0x38] sm:$0xf]
    %v66 = vld [vmem:[#allocation2 + $0x3c] sm:$0xf]
    %v67 = vld [vmem:[%s2] sm:$0x1]
    %v69 = vlaneseq
    %v70 = vshrl.u32 %v69, 7
    %v71 = vsub.s32 0, %v70
    %v72 = vrot.slane %v67, %v71
    %v76 = vunpack.c.l.b16 %v49
    %v77 = vunpack.c.l.b16 %v50
    %v78 = vpack.c.b16 %v77, %v76
    %v96 = vunpack.c.l.b16 %v51
    %v97 = vunpack.c.l.b16 %v52
    %v98 = vunpack.c.l.b16 %v53
    %v99 = vunpack.c.l.b16 %v54
    %v100 = vunpack.c.l.b16 %v55
    %v101 = vunpack.c.l.b16 %v56
    %v102 = vunpack.c.l.b16 %v57
    %v103 = vunpack.c.l.b16 %v58
    %v104 = vunpack.c.l.b16 %v59
    %v105 = vunpack.c.l.b16 %v60
    %v106 = vunpack.c.l.b16 %v61
    %v107 = vunpack.c.l.b16 %v62
    %v108 = vunpack.c.l.b16 %v63
    %v109 = vunpack.c.l.b16 %v64
    %v110 = vunpack.c.l.b16 %v65
    %v111 = vunpack.c.l.b16 %v66
    %v112 = vpack.c.b16 %v97, %v96
    %v113 = vpack.c.b16 %v99, %v98
    %v114 = vpack.c.b16 %v101, %v100
    %v115 = vpack.c.b16 %v103, %v102
    %v116 = vpack.c.b16 %v105, %v104
    %v117 = vpack.c.b16 %v107, %v106
    %v118 = vpack.c.b16 %v109, %v108
    %v119 = vpack.c.b16 %v111, %v110
    %128 = vmatprep.subr.bf16.mxu0 0
    %129 = vmatpush1.bf16.msra.mxu0 %v112
    %130 = vmatprep.subr.bf16.mxu0 0
    %131 = vmatpush1.bf16.msra.mxu0 %v113
    %132 = vmatprep.subr.bf16.mxu0 0
    %133 = vmatpush1.bf16.msra.mxu0 %v114
    %134 = vmatprep.subr.bf16.mxu0 0
    %135 = vmatpush1.bf16.msra.mxu0 %v115
    %136 = vmatprep.subr.bf16.mxu0 0
    %137 = vmatpush1.bf16.msra.mxu0 %v116
    %138 = vmatprep.subr.bf16.mxu0 0
    %139 = vmatpush1.bf16.msra.mxu0 %v117
    %140 = vmatprep.subr.bf16.mxu0 0
    %141 = vmatpush1.bf16.msra.mxu0 %v118
    %142 = vmatprep.subr.bf16.mxu0 0
    %143 = vmatpush1.bf16.msra.mxu0 %v119
    %144 = vmatprep.subr.bf16.mxu0 0
    %145 = vmatpush1.bf16.msra.mxu0 0
    %146 = vmatprep.subr.bf16.mxu0 0
    %147 = vmatpush1.bf16.msra.mxu0 0
    %148 = vmatprep.subr.bf16.mxu0 0
    %149 = vmatpush1.bf16.msra.mxu0 0
    %150 = vmatprep.subr.bf16.mxu0 0
    %151 = vmatpush1.bf16.msra.mxu0 0
    %152 = vmatprep.subr.bf16.mxu0 0
    %153 = vmatpush1.bf16.msra.mxu0 0
    %154 = vmatprep.subr.bf16.mxu0 0
    %155 = vmatpush1.bf16.msra.mxu0 0
    %156 = vmatprep.subr.bf16.mxu0 0
    %157 = vmatpush1.bf16.msra.mxu0 0
    %158 = vmatprep.subr.bf16.mxu0 0
    %159 = vmatpush1.bf16.msra.mxu0 0
    %160 = vmatprep.mubr.bf16.mxu0 0
    %161 = vmatmul.mubr.bf16.gmra.mrb[0].mxu0 %v78
    %v162 = vpop.f32.mrb[0].mxu0
    %v163 = vadd.f32 %v72, %v162
    %v164 = vpop.f32.mrb[0].mxu0
    %v165 = vpop.f32.mrb[0].mxu0
    %v166 = vadd.f32 %v72, %v165
    %v167 = vpop.f32.mrb[0].mxu0
    %168 = vdwg.mxu0
    %v169 = vmax.f32 %v163, 0.0
    %v170 = vmax.f32 %v166, 0.0
    %v171 = vpack.c.bf16 %v170, %v169
    %v172 = vld [vmem:[#allocation4] sm:$0xf]
    %v173 = vld [vmem:[#allocation4 + $0x4] sm:$0xf]
    %v174 = vld [vmem:[#allocation4 + $0x8] sm:$0xf]
    %v175 = vld [vmem:[#allocation4 + $0xc] sm:$0xf]
    %v176 = vld [vmem:[#allocation4 + $0x10] sm:$0xf]
    %v177 = vld [vmem:[#allocation4 + $0x14] sm:$0xf]
    %v178 = vld [vmem:[#allocation4 + $0x18] sm:$0xf]
    %v179 = vld [vmem:[#allocation4 + $0x1c] sm:$0xf]
    %v180 = vld [vmem:[#allocation4 + $0x20] sm:$0xf]
    %v181 = vld [vmem:[#allocation4 + $0x24] sm:$0xf]
    %v182 = vld [vmem:[#allocation4 + $0x28] sm:$0xf]
    %v183 = vld [vmem:[#allocation4 + $0x2c] sm:$0xf]
    %v184 = vld [vmem:[#allocation4 + $0x30] sm:$0xf]
    %v185 = vld [vmem:[#allocation4 + $0x34] sm:$0xf]
    %v186 = vld [vmem:[#allocation4 + $0x38] sm:$0xf]
    %v187 = vld [vmem:[#allocation4 + $0x3c] sm:$0xf]
    %v188 = vld [vmem:[%s4] sm:$0x1]
    %v190 = vlaneseq
    %v191 = vshrl.u32 %v190, 7
    %v192 = vsub.s32 0, %v191
    %v193 = vrot.slane %v188, %v192
    %v211 = vunpack.c.l.b16 %v172
    %v212 = vunpack.c.l.b16 %v173
    %v213 = vunpack.c.l.b16 %v174
    %v214 = vunpack.c.l.b16 %v175
    %v215 = vunpack.c.l.b16 %v176
    %v216 = vunpack.c.l.b16 %v177
    %v217 = vunpack.c.l.b16 %v178
    %v218 = vunpack.c.l.b16 %v179
    %v219 = vunpack.c.l.b16 %v180
    %v220 = vunpack.c.l.b16 %v181
    %v221 = vunpack.c.l.b16 %v182
    %v222 = vunpack.c.l.b16 %v183
    %v223 = vunpack.c.l.b16 %v184
    %v224 = vunpack.c.l.b16 %v185
    %v225 = vunpack.c.l.b16 %v186
    %v226 = vunpack.c.l.b16 %v187
    %v227 = vpack.c.b16 %v212, %v211
    %v228 = vpack.c.b16 %v214, %v213
    %v229 = vpack.c.b16 %v216, %v215
    %v230 = vpack.c.b16 %v218, %v217
    %v231 = vpack.c.b16 %v220, %v219
    %v232 = vpack.c.b16 %v222, %v221
    %v233 = vpack.c.b16 %v224, %v223
    %v234 = vpack.c.b16 %v226, %v225
    %243 = vmatprep.subr.bf16.mxu0 0
    %244 = vmatpush1.bf16.msra.mxu0 %v227
    %245 = vmatprep.subr.bf16.mxu0 0
    %246 = vmatpush1.bf16.msra.mxu0 %v228
    %247 = vmatprep.subr.bf16.mxu0 0
    %248 = vmatpush1.bf16.msra.mxu0 %v229
    %249 = vmatprep.subr.bf16.mxu0 0
    %250 = vmatpush1.bf16.msra.mxu0 %v230
    %251 = vmatprep.subr.bf16.mxu0 0
    %252 = vmatpush1.bf16.msra.mxu0 %v231
    %253 = vmatprep.subr.bf16.mxu0 0
    %254 = vmatpush1.bf16.msra.mxu0 %v232
    %255 = vmatprep.subr.bf16.mxu0 0
    %256 = vmatpush1.bf16.msra.mxu0 %v233
    %257 = vmatprep.subr.bf16.mxu0 0
    %258 = vmatpush1.bf16.msra.mxu0 %v234
    %259 = vmatprep.subr.bf16.mxu0 0
    %260 = vmatpush1.bf16.msra.mxu0 0
    %261 = vmatprep.subr.bf16.mxu0 0
    %262 = vmatpush1.bf16.msra.mxu0 0
    %263 = vmatprep.subr.bf16.mxu0 0
    %264 = vmatpush1.bf16.msra.mxu0 0
    %265 = vmatprep.subr.bf16.mxu0 0
    %266 = vmatpush1.bf16.msra.mxu0 0
    %267 = vmatprep.subr.bf16.mxu0 0
    %268 = vmatpush1.bf16.msra.mxu0 0
    %269 = vmatprep.subr.bf16.mxu0 0
    %270 = vmatpush1.bf16.msra.mxu0 0
    %271 = vmatprep.subr.bf16.mxu0 0
    %272 = vmatpush1.bf16.msra.mxu0 0
    %273 = vmatprep.subr.bf16.mxu0 0
    %274 = vmatpush1.bf16.msra.mxu0 0
    %275 = vmatprep.mubr.bf16.mxu0 0
    %276 = vmatmul.mubr.bf16.gmra.mrb[0].mxu0 %v171
    %v277 = vpop.f32.mrb[0].mxu0
    %v278 = vadd.f32 %v193, %v277
    %v279 = vpop.f32.mrb[0].mxu0
    %v280 = vpop.f32.mrb[0].mxu0
    %v281 = vadd.f32 %v193, %v280
    %v282 = vpop.f32.mrb[0].mxu0
    %283 = vdwg.mxu0
    %284 = vst [vmem:[%s5] sm:$0xff] %v278
    %285 = vst [vmem:[%s5 + $0x8] sm:$0xff] %v281
    // Predicated region
    $region30: #{_forward_impl.1} parent=1 // pred_check
      _
    $region31: #{_forward_impl.1} parent=1 // pred_check_branch
      %287 = sbr.rel (0) target = $region33
    $region32: #{_forward_impl.1} parent=1 // pred_region
      _
    $region33: #{_forward_impl.1} parent=1 // pred_fallthru
      _
    // Predicated region
    $region34: #{_forward_impl.1} parent=1 // pred_check
      _
    $region35: #{_forward_impl.1} parent=1 // pred_check_branch
      %289 = sbr.rel (0) target = $region37
    $region36: #{_forward_impl.1} parent=1 // pred_region
      _
    $region37: #{_forward_impl.1} parent=1 // pred_fallthru
      _
    %290 = vsyncpa [#allocation3], 1
    %291 = vsyncpa [#allocation5], 1

// kernel: _forward_impl.1
$region0: #{_forward_impl.1}
  #allocation0 [shape = 'u32[]', space=smem, size = 0x4, offset = 0x4, fixed_abs, tag = 'smem constant byte address 0x4 - core index']
  #allocation1 [shape = 'u32[144,128]{1,0:T(1,128)}', space=vmem, size = 0x12000, scoped, tag = 'internal scratch']
  %s0 = inlined_call_operand.vmem [shape: bf16[16,128], index: 0, kind: input, shape index: {}]
  %s1 = inlined_call_operand.hbm [shape: bf16[128,128], index: 1, kind: input, shape index: {}]
  %s2 = inlined_call_operand.vmem [shape: f32[1,128], index: 2, kind: input, shape index: {}]
  %s3 = inlined_call_operand.hbm [shape: bf16[128,128], index: 3, kind: input, shape index: {}]
  %s4 = inlined_call_operand.vmem [shape: f32[1,128], index: 4, kind: input, shape index: {}]
  %s5 = inlined_call_operand.vmem [shape: f32[16,128], index: 5, kind: output, shape index: {}]
  %s6 = sld [smem:[#allocation0]]
  $region38: #{_forward_impl.1} parent=0
    _
  %s8 = ssub.s32 1, %s6
  %s9 = scalar_select 0, %s8, %s6
  $region1: #{_forward_impl.1} parent=0
    #allocation2 [shape = 'u8[32768]{0}', space=vmem, size = 0x8000, scoped, tag = 'input window, operand 1, single buffered']
    #allocation3 [shape = 's32[1]{0}', space=sflag, size = 0x4, scoped, tag = 'scoped memory for _forward_impl.1']
    #allocation4 [shape = 'u8[32768]{0}', space=vmem, size = 0x8000, scoped, tag = 'input window, operand 3, single buffered']
    #allocation5 [shape = 's32[1]{0}', space=sflag, size = 0x4, scoped, tag = 'scoped memory for _forward_impl.1']
    %10 = vsyncpa [#allocation3], 0
    %11 = vsyncpa [#allocation5], 0
    // Predicated region
    $region2: #{_forward_impl.1} parent=1 // pred_check
      _
    $region3: #{_forward_impl.1} parent=1 // pred_check_branch
      %13 = sbr.rel (0) target = $region5
    $region4: #{_forward_impl.1} parent=1 // pred_region
      _
    $region5: #{_forward_impl.1} parent=1 // pred_fallthru
      _
    // Predicated region
    $region6: #{_forward_impl.1} parent=1 // pred_check
      _
    $region7: #{_forward_impl.1} parent=1 // pred_check_branch
      %15 = sbr.rel (0) target = $region9
    $region8: #{_forward_impl.1} parent=1 // pred_region
      %s17 = ssub.s32 1024, 1024
      %18 = vsyncadd [#allocation3], %s17
      %s19 = sshll.u32 [#allocation2], 4
      %s20 = int_to_ptr.vmem [resolvable:$true] %s19
      %25 = dma.hbm_to_vmem [thread:$0]  %s1, 1024, %s20, [#allocation3], 64, 64, 4
    $region9: #{_forward_impl.1} parent=1 // pred_fallthru
      _
    // Predicated region
    $region10: #{_forward_impl.1} parent=1 // pred_check
      _
    $region11: #{_forward_impl.1} parent=1 // pred_check_branch
      %27 = sbr.rel (0) target = $region13
    $region12: #{_forward_impl.1} parent=1 // pred_region
      _
    $region13: #{_forward_impl.1} parent=1 // pred_fallthru
      _
    // Predicated region
    $region14: #{_forward_impl.1} parent=1 // pred_check
      _
    $region15: #{_forward_impl.1} parent=1 // pred_check_branch
      %29 = sbr.rel (0) target = $region17
    $region16: #{_forward_impl.1} parent=1 // pred_region
      %s31 = ssub.s32 1024, 1024
      %32 = vsyncadd [#allocation5], %s31
      %s33 = sshll.u32 [#allocation4], 4
      %s34 = int_to_ptr.vmem [resolvable:$true] %s33
      %39 = dma.hbm_to_vmem [thread:$0]  %s3, 1024, %s34, [#allocation5], 64, 64, 4
    $region17: #{_forward_impl.1} parent=1 // pred_fallthru
      _
    // Predicated region
    $region18: #{_forward_impl.1} parent=1 // pred_check
      _
    $region19: #{_forward_impl.1} parent=1 // pred_check_branch
      %41 = sbr.rel (0) target = $region21
    $region20: #{_forward_impl.1} parent=1 // pred_region
      _
    $region21: #{_forward_impl.1} parent=1 // pred_fallthru
      _
    // Predicated region
    $region22: #{_forward_impl.1} parent=1 // pred_check
      _
    $region23: #{_forward_impl.1} parent=1 // pred_check_branch
      %43 = sbr.rel (0) target = $region25
    $region24: #{_forward_impl.1} parent=1 // pred_region
      %44 = dma.done [#allocation3], 1024
    $region25: #{_forward_impl.1} parent=1 // pred_fallthru
      _
    // Predicated region
    $region26: #{_forward_impl.1} parent=1 // pred_check
      _
    $region27: #{_forward_impl.1} parent=1 // pred_check_branch
      %46 = sbr.rel (0) target = $region29
    $region28: #{_forward_impl.1} parent=1 // pred_region
      %47 = dma.done [#allocation5], 1024
    $region29: #{_forward_impl.1} parent=1 // pred_fallthru
      _
    %v49 = vld [vmem:[%s0] sm:$0xf]
    %v50 = vld [vmem:[%s0 + $0x4] sm:$0xf]
    %v51 = vld [vmem:[#allocation2] sm:$0xf]
    %v52 = vld [vmem:[#allocation2 + $0x4] sm:$0xf]
    %v53 = vld [vmem:[#allocation2 + $0x8] sm:$0xf]
    %v54 = vld [vmem:[#allocation2 + $0xc] sm:$0xf]
    %v55 = vld [vmem:[#allocation2 + $0x10] sm:$0xf]
    %v56 = vld [vmem:[#allocation2 + $0x14] sm:$0xf]
    %v57 = vld [vmem:[#allocation2 + $0x18] sm:$0xf]
    %v58 = vld [vmem:[#allocation2 + $0x1c] sm:$0xf]
    %v59 = vld [vmem:[#allocation2 + $0x20] sm:$0xf]
    %v60 = vld [vmem:[#allocation2 + $0x24] sm:$0xf]
    %v61 = vld [vmem:[#allocation2 + $0x28] sm:$0xf]
    %v62 = vld [vmem:[#allocation2 + $0x2c] sm:$0xf]
    %v63 = vld [vmem:[#allocation2 + $0x30] sm:$0xf]
    %v64 = vld [vmem:[#allocation2 + $0x34] sm:$0xf]
    %v65 = vld [vmem:[#allocation2 + $0x38] sm:$0xf]
    %v66 = vld [vmem:[#allocation2 + $0x3c] sm:$0xf]
    %v67 = vld [vmem:[%s2] sm:$0x1]
    %v69 = vlaneseq
    %v70 = vshrl.u32 %v69, 7
    %v71 = vsub.s32 0, %v70
    %v72 = vrot.slane %v67, %v71
    %v76 = vunpack.c.l.b16 %v49
    %v77 = vunpack.c.l.b16 %v50
    %v78 = vpack.c.b16 %v77, %v76
    %v96 = vunpack.c.l.b16 %v51
    %v97 = vunpack.c.l.b16 %v52
    %v98 = vunpack.c.l.b16 %v53
    %v99 = vunpack.c.l.b16 %v54
    %v100 = vunpack.c.l.b16 %v55
    %v101 = vunpack.c.l.b16 %v56
    %v102 = vunpack.c.l.b16 %v57
    %v103 = vunpack.c.l.b16 %v58
    %v104 = vunpack.c.l.b16 %v59
    %v105 = vunpack.c.l.b16 %v60
    %v106 = vunpack.c.l.b16 %v61
    %v107 = vunpack.c.l.b16 %v62
    %v108 = vunpack.c.l.b16 %v63
    %v109 = vunpack.c.l.b16 %v64
    %v110 = vunpack.c.l.b16 %v65
    %v111 = vunpack.c.l.b16 %v66
    %v112 = vpack.c.b16 %v97, %v96
    %v113 = vpack.c.b16 %v99, %v98
    %v114 = vpack.c.b16 %v101, %v100
    %v115 = vpack.c.b16 %v103, %v102
    %v116 = vpack.c.b16 %v105, %v104
    %v117 = vpack.c.b16 %v107, %v106
    %v118 = vpack.c.b16 %v109, %v108
    %v119 = vpack.c.b16 %v111, %v110
    %128 = vmatprep.subr.bf16.mxu0 0
    %129 = vmatpush1.bf16.msra.mxu0 %v112
    %130 = vmatprep.subr.bf16.mxu0 0
    %131 = vmatpush1.bf16.msra.mxu0 %v113
    %132 = vmatprep.subr.bf16.mxu0 0
    %133 = vmatpush1.bf16.msra.mxu0 %v114
    %134 = vmatprep.subr.bf16.mxu0 0
    %135 = vmatpush1.bf16.msra.mxu0 %v115
    %136 = vmatprep.subr.bf16.mxu0 0
    %137 = vmatpush1.bf16.msra.mxu0 %v116
    %138 = vmatprep.subr.bf16.mxu0 0
    %139 = vmatpush1.bf16.msra.mxu0 %v117
    %140 = vmatprep.subr.bf16.mxu0 0
    %141 = vmatpush1.bf16.msra.mxu0 %v118
    %142 = vmatprep.subr.bf16.mxu0 0
    %143 = vmatpush1.bf16.msra.mxu0 %v119
    %144 = vmatprep.subr.bf16.mxu0 0
    %145 = vmatpush1.bf16.msra.mxu0 0
    %146 = vmatprep.subr.bf16.mxu0 0
    %147 = vmatpush1.bf16.msra.mxu0 0
    %148 = vmatprep.subr.bf16.mxu0 0
    %149 = vmatpush1.bf16.msra.mxu0 0
    %150 = vmatprep.subr.bf16.mxu0 0
    %151 = vmatpush1.bf16.msra.mxu0 0
    %152 = vmatprep.subr.bf16.mxu0 0
    %153 = vmatpush1.bf16.msra.mxu0 0
    %154 = vmatprep.subr.bf16.mxu0 0
    %155 = vmatpush1.bf16.msra.mxu0 0
    %156 = vmatprep.subr.bf16.mxu0 0
    %157 = vmatpush1.bf16.msra.mxu0 0
    %158 = vmatprep.subr.bf16.mxu0 0
    %159 = vmatpush1.bf16.msra.mxu0 0
    %160 = vmatprep.mubr.bf16.mxu0 0
    %161 = vmatmul.mubr.bf16.gmra.mrb[0].mxu0 %v78
    %v162 = vpop.f32.mrb[0].mxu0
    %v163 = vadd.f32 %v72, %v162
    %v164 = vpop.f32.mrb[0].mxu0
    %v165 = vpop.f32.mrb[0].mxu0
    %v166 = vadd.f32 %v72, %v165
    %v167 = vpop.f32.mrb[0].mxu0
    %168 = vdwg.mxu0
    %v169 = vmax.f32 %v163, 0.0
    %v170 = vmax.f32 %v166, 0.0
    %v171 = vpack.c.bf16 %v170, %v169
    %v172 = vld [vmem:[#allocation4] sm:$0xf]
    %v173 = vld [vmem:[#allocation4 + $0x4] sm:$0xf]
    %v174 = vld [vmem:[#allocation4 + $0x8] sm:$0xf]
    %v175 = vld [vmem:[#allocation4 + $0xc] sm:$0xf]
    %v176 = vld [vmem:[#allocation4 + $0x10] sm:$0xf]
    %v177 = vld [vmem:[#allocation4 + $0x14] sm:$0xf]
    %v178 = vld [vmem:[#allocation4 + $0x18] sm:$0xf]
    %v179 = vld [vmem:[#allocation4 + $0x1c] sm:$0xf]
    %v180 = vld [vmem:[#allocation4 + $0x20] sm:$0xf]
    %v181 = vld [vmem:[#allocation4 + $0x24] sm:$0xf]
    %v182 = vld [vmem:[#allocation4 + $0x28] sm:$0xf]
    %v183 = vld [vmem:[#allocation4 + $0x2c] sm:$0xf]
    %v184 = vld [vmem:[#allocation4 + $0x30] sm:$0xf]
    %v185 = vld [vmem:[#allocation4 + $0x34] sm:$0xf]
    %v186 = vld [vmem:[#allocation4 + $0x38] sm:$0xf]
    %v187 = vld [vmem:[#allocation4 + $0x3c] sm:$0xf]
    %v188 = vld [vmem:[%s4] sm:$0x1]
    %v190 = vlaneseq
    %v191 = vshrl.u32 %v190, 7
    %v192 = vsub.s32 0, %v191
    %v193 = vrot.slane %v188, %v192
    %v211 = vunpack.c.l.b16 %v172
    %v212 = vunpack.c.l.b16 %v173
    %v213 = vunpack.c.l.b16 %v174
    %v214 = vunpack.c.l.b16 %v175
    %v215 = vunpack.c.l.b16 %v176
    %v216 = vunpack.c.l.b16 %v177
    %v217 = vunpack.c.l.b16 %v178
    %v218 = vunpack.c.l.b16 %v179
    %v219 = vunpack.c.l.b16 %v180
    %v220 = vunpack.c.l.b16 %v181
    %v221 = vunpack.c.l.b16 %v182
    %v222 = vunpack.c.l.b16 %v183
    %v223 = vunpack.c.l.b16 %v184
    %v224 = vunpack.c.l.b16 %v185
    %v225 = vunpack.c.l.b16 %v186
    %v226 = vunpack.c.l.b16 %v187
    %v227 = vpack.c.b16 %v212, %v211
    %v228 = vpack.c.b16 %v214, %v213
    %v229 = vpack.c.b16 %v216, %v215
    %v230 = vpack.c.b16 %v218, %v217
    %v231 = vpack.c.b16 %v220, %v219
    %v232 = vpack.c.b16 %v222, %v221
    %v233 = vpack.c.b16 %v224, %v223
    %v234 = vpack.c.b16 %v226, %v225
    %243 = vmatprep.subr.bf16.mxu0 0
    %244 = vmatpush1.bf16.msra.mxu0 %v227
    %245 = vmatprep.subr.bf16.mxu0 0
    %246 = vmatpush1.bf16.msra.mxu0 %v228
    %247 = vmatprep.subr.bf16.mxu0 0
    %248 = vmatpush1.bf16.msra.mxu0 %v229
    %249 = vmatprep.subr.bf16.mxu0 0
    %250 = vmatpush1.bf16.msra.mxu0 %v230
    %251 = vmatprep.subr.bf16.mxu0 0
    %252 = vmatpush1.bf16.msra.mxu0 %v231
    %253 = vmatprep.subr.bf16.mxu0 0
    %254 = vmatpush1.bf16.msra.mxu0 %v232
    %255 = vmatprep.subr.bf16.mxu0 0
    %256 = vmatpush1.bf16.msra.mxu0 %v233
    %257 = vmatprep.subr.bf16.mxu0 0
    %258 = vmatpush1.bf16.msra.mxu0 %v234
    %259 = vmatprep.subr.bf16.mxu0 0
    %260 = vmatpush1.bf16.msra.mxu0 0
    %261 = vmatprep.subr.bf16.mxu0 0
    %262 = vmatpush1.bf16.msra.mxu0 0
    %263 = vmatprep.subr.bf16.mxu0 0
    %264 = vmatpush1.bf16.msra.mxu0 0
    %265 = vmatprep.subr.bf16.mxu0 0
    %266 = vmatpush1.bf16.msra.mxu0 0
    %267 = vmatprep.subr.bf16.mxu0 0
    %268 = vmatpush1.bf16.msra.mxu0 0
    %269 = vmatprep.subr.bf16.mxu0 0
    %270 = vmatpush1.bf16.msra.mxu0 0
    %271 = vmatprep.subr.bf16.mxu0 0
    %272 = vmatpush1.bf16.msra.mxu0 0
    %273 = vmatprep.subr.bf16.mxu0 0
    %274 = vmatpush1.bf16.msra.mxu0 0
    %275 = vmatprep.mubr.bf16.mxu0 0
    %276 = vmatmul.mubr.bf16.gmra.mrb[0].mxu0 %v171
    %v277 = vpop.f32.mrb[0].mxu0
    %v278 = vadd.f32 %v193, %v277
    %v279 = vpop.f32.mrb[0].mxu0
    %v280 = vpop.f32.mrb[0].mxu0
    %v281 = vadd.f32 %v193, %v280
    %v282 = vpop.f32.mrb[0].mxu0
    %283 = vdwg.mxu0
    %284 = vst [vmem:[%s5] sm:$0xff] %v278
    %285 = vst [vmem:[%s5 + $0x8] sm:$0xff] %v281
    // Predicated region
    $region30: #{_forward_impl.1} parent=1 // pred_check
      _
    $region31: #{_forward_impl.1} parent=1 // pred_check_branch
      %287 = sbr.rel (0) target = $region33
    $region32: #{_forward_impl.1} parent=1 // pred_region
      _
    $region33: #{_forward_impl.1} parent=1 // pred_fallthru
      _
    // Predicated region
    $region34: #{_forward_impl.1} parent=1 // pred_check
      _
    $region35: #{_forward_impl.1} parent=1 // pred_check_branch
      %289 = sbr.rel (0) target = $region37
    $region36: #{_forward_impl.1} parent=1 // pred_region
      _
    $region37: #{_forward_impl.1} parent=1 // pred_fallthru
      _
    %290 = vsyncpa [#allocation3], 1
    %291 = vsyncpa [#allocation5], 1

</llo_original>
